<compile_context>
chip_gen: v7x
topology: tpu7x:2x2x1
jax: 0.10.0
libtpu: 0.0.40
codegen_flags: <defaults>
</compile_context>

<pallas_src>
import jax
import jax.numpy as jnp
from jax.experimental import pallas as pl
from jax.experimental.pallas import tpu as pltpu


# ---------------------------------------------------------------------------
# One-time parameter preparation (pure XLA; call once when parameters load).

def fold_bn(gamma, beta, running_mean, running_var, eps=1e-5):
    """Eval-mode BatchNorm folded to a per-channel affine (scale, bias)."""
    scale = gamma / jnp.sqrt(running_var + eps)
    bias = beta - running_mean * scale
    return scale, bias


def banded_conv_weight(w_hwio, scale, width):
    """Fold the BN scale into the 3x3 conv weight and expand it into a
    block-banded (Toeplitz) matrix so the conv along W becomes one matmul on
    (W*Cin)-wide rows.  The three row taps (kh = 0,1,2) are stacked along K so
    the kernel does a single matmul per stage against [up | center | down].

    Returns (3*W*Cin, W*Cout) with
      out[kh*W*Cin + wp*Cin + c, w*Cout + o] = w[kh, wp - w + 1, c, o] * scale[o]
    and zero outside the band — W-direction SAME padding is encoded in the band.
    """
    kh, kw, cin, cout = w_hwio.shape
    w_fold = w_hwio * scale[None, None, None, :]
    # band[k, wp, w] = 1 iff wp == w + k - 1
    band = jnp.stack(
        [jnp.eye(width, k=1 - k, dtype=w_hwio.dtype) for k in range(kw)], axis=0)
    big = jnp.einsum("kpw,jkco->jpcwo", band, w_fold)      # (3, W, Cin, W, Cout)
    return big.reshape(kh * width * cin, width * cout)


def prepare_double_conv_params(params, width, weight_dtype=jnp.bfloat16):
    """Hoisted out of the jitted forward: BN fold, banded expansion, K-concat
    of the 3 taps, bias tiling to lane layout, bf16 cast of the weights."""
    w1, w2 = params["w1"], params["w2"]
    cmid, cout = w1.shape[-1], w2.shape[-1]
    s1, b1 = fold_bn(*params["bn1"])
    s2, b2 = fold_bn(*params["bn2"])
    return {
        "bw1": banded_conv_weight(w1, s1, width).astype(weight_dtype),
        "b1": jnp.tile(b1, width).reshape(1, width * cmid).astype(jnp.float32),
        "bw2": banded_conv_weight(w2, s2, width).astype(weight_dtype),
        "b2": jnp.tile(b2, width).reshape(1, width * cout).astype(jnp.float32),
    }


# ---------------------------------------------------------------------------
# Fused kernel: Conv3x3+BN+ReLU -> Conv3x3+BN+ReLU on a (B_TILE*H, W*C) slab.

def _double_conv_kernel_factory(H, M):
    f32 = jnp.float32
    bf16 = jnp.bfloat16

    def kernel(x_ref, w1_ref, b1_ref, w2_ref, b2_ref, out_ref):
        # x_ref:   (M, W*Cin)  f32, M = B_TILE*H rows (B_TILE images stacked)
        # w1_ref:  (3*W*Cin,  W*Cmid) bf16, taps concatenated along K, BN folded
        # b1_ref:  (1, W*Cmid) f32
        # w2_ref:  (3*W*Cmid, W*Cout) bf16
        # b2_ref:  (1, W*Cout) f32
        # out_ref: (M, W*Cout) f32, lane-dense (full-width vst)

        # Halo-row masks, built ONCE and reused by both stages.  `% H` keeps the
        # sublane roll from leaking rows across images in the folded batch.
        rows = jax.lax.broadcasted_iota(jnp.int32, (M, 1), 0) % H
        up_ok = rows >= 1          # a row above exists within the same image
        dn_ok = rows <= H - 2      # a row below exists within the same image

        def conv_bn_relu(x2d, w_ref, b_ref):
            up = jnp.where(up_ok, pltpu.roll(x2d, shift=1, axis=0), 0.0)
            dn = jnp.where(dn_ok, pltpu.roll(x2d, shift=M - 1, axis=0), 0.0)
            # [up | center | down] along lanes -> one matmul per stage.
            lhs = jnp.concatenate([up, x2d, dn], axis=-1).astype(bf16)
            acc = jnp.dot(lhs, w_ref[...], preferred_element_type=f32)
            # BN scale folded into w; bias + ReLU stay on the f32 VPU path.
            return jnp.maximum(acc + b_ref[...], 0.0)

        y1 = conv_bn_relu(x_ref[...], w1_ref, b1_ref)       # (M, W*Cmid), never leaves VMEM
        out_ref[...] = conv_bn_relu(y1, w2_ref, b2_ref).astype(out_ref.dtype)

    return kernel


def _pick_batch_tile(n, h, target_rows=256):
    """Largest divisor of n with b*h <= target_rows, but keep >=2 grid steps
    when the batch allows so v7x can shard the parallel axis over its 2 TCs."""
    divisors = [d for d in range(1, n + 1) if n % d == 0]
    cand = [d for d in divisors if d * h <= target_rows] or [1]
    b = max(cand)
    if n >= 2 and n // b < 2:
        two_step = [d for d in cand if n // d >= 2]
        if two_step:
            b = max(two_step)
    return b


@jax.jit
def double_convolution(x_nchw, prepped):
    """Forward of DoubleConvolution (eval-mode BN). (N,Cin,H,W) -> (N,Cout,H,W)."""
    N, Cin, H, W = x_nchw.shape
    bw1, b1f, bw2, b2f = prepped["bw1"], prepped["b1"], prepped["bw2"], prepped["b2"]
    Cmid = bw1.shape[1] // W
    Cout = bw2.shape[1] // W

    b_tile = _pick_batch_tile(N, H)
    M = b_tile * H

    # Layout glue: NCHW -> NHWC -> (N*H, W*Cin), channels on the lane axis.
    # TODO(synk): thread NHWC / lane-flattened layout through the surrounding
    # model to drop these two extra HBM transpose passes.
    x_flat = jnp.transpose(x_nchw, (0, 2, 3, 1)).reshape(N * H, W * Cin)

    # VMEM guard: banded weights scale as 3*W^2*C^2 per stage.
    itemsize = jnp.dtype(bw1.dtype).itemsize
    weight_bytes = (bw1.shape[0] * bw1.shape[1] + bw2.shape[0] * bw2.shape[1]) * itemsize
    act_bytes = 2 * 4 * M * W * (Cin + Cout)                 # double-buffered x/out blocks
    scratch_bytes = 4 * 4 * M * 3 * W * max(Cin, Cmid)       # concat LHS + intermediates (rough)
    vmem_est = 2 * weight_bytes + act_bytes + scratch_bytes
    compiler_kwargs = {"dimension_semantics": ("parallel",)}
    if vmem_est > (14 << 20):
        # TODO(synk): fall back to H/W-tiled, channel-padded conv when the
        # banded-weight path no longer fits VMEM (large W * C), esp. on v7x.
        assert vmem_est <= (56 << 20), (
            f"banded-weight DoubleConvolution needs ~{vmem_est >> 20} MiB VMEM; "
            "exceeds v7x capacity — use a spatially tiled variant instead.")
        compiler_kwargs["vmem_limit_bytes"] = int(min(2 * vmem_est, 60 << 20))

    kernel = _double_conv_kernel_factory(H, M)

    out_flat = pl.pallas_call(
        kernel,
        out_shape=jax.ShapeDtypeStruct((N * H, W * Cout), jnp.float32),
        grid_spec=pltpu.PrefetchScalarGridSpec(
            num_scalar_prefetch=0,
            grid=(N // b_tile,),
            in_specs=[
                pl.BlockSpec((M, W * Cin), lambda n: (n, 0)),
                pl.BlockSpec((3 * W * Cin, W * Cmid), lambda n: (0, 0)),
                pl.BlockSpec((1, W * Cmid), lambda n: (0, 0)),
                pl.BlockSpec((3 * W * Cmid, W * Cout), lambda n: (0, 0)),
                pl.BlockSpec((1, W * Cout), lambda n: (0, 0)),
            ],
            out_specs=pl.BlockSpec((M, W * Cout), lambda n: (n, 0)),
        ),
        compiler_params=pltpu.CompilerParams(**compiler_kwargs),
    )(x_flat, bw1, b1f, bw2, b2f)

    # (N*H, W*Cout) -> (N, H, W, Cout) -> NCHW
    return jnp.transpose(out_flat.reshape(N, H, W, Cout), (0, 3, 1, 2))


# ---------------------------------------------------------------------------
# Pure-JAX f32 reference (original module semantics, correctness check only).

def _ref_stage(x_nhwc, w_hwio, scale, bias):
    y = jax.lax.conv_general_dilated(
        x_nhwc, w_hwio, window_strides=(1, 1), padding="SAME",
        dimension_numbers=("NHWC", "HWIO", "NHWC"))
    return jnp.maximum(y * scale + bias, 0.0)


def _ref_double_conv(x_nchw, params):
    x = jnp.transpose(x_nchw, (0, 2, 3, 1))
    s1, b1 = fold_bn(*params["bn1"])
    s2, b2 = fold_bn(*params["bn2"])
    y = _ref_stage(x, params["w1"], s1, b1)
    y = _ref_stage(y, params["w2"], s2, b2)
    return jnp.transpose(y, (0, 3, 1, 2))


if __name__ == "__main__":
    key = jax.random.PRNGKey(0)
    N, Cin, Cout, H, W = 2, 4, 8, 16, 16

    k = jax.random.split(key, 8)
    x = jax.random.normal(k[0], (N, Cin, H, W), jnp.float32)

    # Deterministic synthetic parameters (no checkpoint load).
    # Conv weights in HWIO layout (equivalent to PyTorch OIHW transposed).
    w1 = jax.random.normal(k[1], (3, 3, Cin, Cout), jnp.float32) * 0.1
    w2 = jax.random.normal(k[2], (3, 3, Cout, Cout), jnp.float32) * 0.1
    # BatchNorm params: (gamma, beta, running_mean, running_var) — eval-mode BN.
    bn1 = (jax.random.normal(k[3], (Cout,), jnp.float32) * 0.1 + 1.0,
           jax.random.normal(k[4], (Cout,), jnp.float32) * 0.1,
           jax.random.normal(k[5], (Cout,), jnp.float32) * 0.1,
           jax.random.uniform(k[6], (Cout,), jnp.float32, 0.5, 1.5))
    bn2 = (jnp.ones((Cout,), jnp.float32),
           jnp.zeros((Cout,), jnp.float32),
           jnp.zeros((Cout,), jnp.float32),
           jnp.ones((Cout,), jnp.float32))
    params = {"w1": w1, "w2": w2, "bn1": bn1, "bn2": bn2}

    # One-time prep (banded bf16 weights, tiled biases) — outside the hot path.
    prepped = jax.tree_util.tree_map(jax.block_until_ready,
                                     prepare_double_conv_params(params, W))

    out = jax.block_until_ready(double_convolution(x, prepped))
    ref = jax.block_until_ready(_ref_double_conv(x, params))

    assert out.shape == (N, Cout, H, W), out.shape
    err = float(jnp.max(jnp.abs(out - ref)))
    # Tolerance accounts for bf16 weight/LHS quantization (accumulation is f32).
    assert jnp.allclose(out, ref, atol=5e-2, rtol=5e-2), f"max abs err = {err}"
    print("KERNEL_OK")
</pallas_src>

<mosaic_0001>
module attributes {stable_mosaic.version = 11 : i64} {
  func.func @kernel(%arg0: i32, %arg1: memref<16x64xf32, #tpu.memory_space<vmem>>, %arg2: memref<192x128xbf16, #tpu.memory_space<vmem>>, %arg3: memref<1x128xf32, #tpu.memory_space<vmem>>, %arg4: memref<384x128xbf16, #tpu.memory_space<vmem>>, %arg5: memref<1x128xf32, #tpu.memory_space<vmem>>, %arg6: memref<16x128xf32, #tpu.memory_space<vmem>>) attributes {dimension_semantics = [#tpu.dimension_semantics<parallel>], iteration_bounds = array<i64: 2>, scalar_prefetch = 0 : i64, scratch_operands = 0 : i64, tpu.core_type = #tpu.core_type<tc>, window_params = [{transform_indices = @transform_0, window_bounds = array<i64: 16, 64>}, {pipeline_mode = #tpu.pipeline_mode<synchronous>, transform_indices = @transform_1, window_bounds = array<i64: 192, 128>}, {pipeline_mode = #tpu.pipeline_mode<synchronous>, transform_indices = @transform_2, window_bounds = array<i64: 1, 128>}, {pipeline_mode = #tpu.pipeline_mode<synchronous>, transform_indices = @transform_3, window_bounds = array<i64: 384, 128>}, {pipeline_mode = #tpu.pipeline_mode<synchronous>, transform_indices = @transform_4, window_bounds = array<i64: 1, 128>}, {transform_indices = @transform_5, window_bounds = array<i64: 16, 128>}]} {
    %0 = tpu.iota {dimensions = array<i32: 0>} : vector<16x1xi32>
    %c16_i32 = arith.constant 16 : i32
    %c0_i32 = arith.constant 0 : i32
    %1 = arith.cmpi eq, %c16_i32, %c0_i32 : i32
    %c1_i32 = arith.constant 1 : i32
    %2 = arith.select %1, %c1_i32, %c16_i32 : i32
    %3 = vector.broadcast %2 : i32 to vector<16x1xi32>
    %4 = arith.remsi %0, %3 : vector<16x1xi32>
    %c0_i32_0 = arith.constant 0 : i32
    %5 = vector.broadcast %c0_i32_0 : i32 to vector<16x1xi32>
    %6 = arith.cmpi ne, %4, %5 : vector<16x1xi32>
    %c0_i32_1 = arith.constant 0 : i32
    %7 = vector.broadcast %c0_i32_1 : i32 to vector<16x1xi32>
    %8 = arith.cmpi slt, %4, %7 : vector<16x1xi32>
    %c0_i32_2 = arith.constant 0 : i32
    %9 = arith.cmpi slt, %2, %c0_i32_2 : i32
    %10 = vector.broadcast %9 : i1 to vector<16x1xi1>
    %11 = vector.broadcast %10 : vector<16x1xi1> to vector<16x1xi1>
    %12 = arith.xori %8, %11 : vector<16x1xi1>
    %13 = arith.andi %12, %6 : vector<16x1xi1>
    %14 = vector.broadcast %2 : i32 to vector<16x1xi32>
    %15 = arith.addi %4, %14 : vector<16x1xi32>
    %16 = arith.select %13, %15, %4 : vector<16x1xi1>, vector<16x1xi32>
    %c1_i32_3 = arith.constant 1 : i32
    %17 = vector.broadcast %c1_i32_3 : i32 to vector<16x1xi32>
    %18 = arith.cmpi sge, %16, %17 : vector<16x1xi32>
    %c14_i32 = arith.constant 14 : i32
    %19 = vector.broadcast %c14_i32 : i32 to vector<16x1xi32>
    %20 = arith.cmpi sle, %16, %19 : vector<16x1xi32>
    %c0 = arith.constant 0 : index
    %c0_4 = arith.constant 0 : index
    %21 = vector.load %arg1[%c0, %c0_4] : memref<16x64xf32, #tpu.memory_space<vmem>>, vector<16x64xf32>
    %c1_i32_5 = arith.constant 1 : i32
    %22 = tpu.dynamic_rotate %21 by %c1_i32_5 dim 0 : vector<16x64xf32>, i32 -> vector<16x64xf32>
    %cst = arith.constant 0.000000e+00 : f32
    %23 = vector.shape_cast %18 : vector<16x1xi1> to vector<16x1xi1>
    %24 = vector.broadcast %23 : vector<16x1xi1> to vector<16x64xi1>
    %25 = vector.broadcast %cst : f32 to vector<16x64xf32>
    %26 = arith.select %24, %22, %25 : vector<16x64xi1>, vector<16x64xf32>
    %c15_i32 = arith.constant 15 : i32
    %27 = tpu.dynamic_rotate %21 by %c15_i32 dim 0 : vector<16x64xf32>, i32 -> vector<16x64xf32>
    %cst_6 = arith.constant 0.000000e+00 : f32
    %28 = vector.shape_cast %20 : vector<16x1xi1> to vector<16x1xi1>
    %29 = vector.broadcast %28 : vector<16x1xi1> to vector<16x64xi1>
    %30 = vector.broadcast %cst_6 : f32 to vector<16x64xf32>
    %31 = arith.select %29, %27, %30 : vector<16x64xi1>, vector<16x64xf32>
    %32 = tpu.concatenate %26, %21, %31 in 1 : vector<16x64xf32>, vector<16x64xf32>, vector<16x64xf32> -> vector<16x192xf32>
    %33 = arith.truncf %32 : vector<16x192xf32> to vector<16x192xbf16>
    %c0_7 = arith.constant 0 : index
    %c0_8 = arith.constant 0 : index
    %34 = vector.load %arg2[%c0_7, %c0_8] : memref<192x128xbf16, #tpu.memory_space<vmem>>, vector<192x128xbf16>
    %cst_9 = arith.constant dense<0.000000e+00> : vector<16x128xf32>
    %35 = tpu.matmul %33, %34, %cst_9 {dimension_numbers = #tpu.dot_dimension_numbers<[1], [0], [0], [1], [0, 0, 1, 1], [], []>} : vector<16x192xbf16>, vector<192x128xbf16>, vector<16x128xf32> -> vector<16x128xf32>
    %c0_10 = arith.constant 0 : index
    %c0_11 = arith.constant 0 : index
    %36 = vector.load %arg3[%c0_10, %c0_11] : memref<1x128xf32, #tpu.memory_space<vmem>>, vector<1x128xf32>
    %37 = vector.broadcast %36 : vector<1x128xf32> to vector<16x128xf32>
    %38 = arith.addf %35, %37 : vector<16x128xf32>
    %cst_12 = arith.constant 0.000000e+00 : f32
    %39 = vector.broadcast %cst_12 : f32 to vector<16x128xf32>
    %40 = arith.maximumf %38, %39 : vector<16x128xf32>
    %c1_i32_13 = arith.constant 1 : i32
    %41 = tpu.dynamic_rotate %40 by %c1_i32_13 dim 0 : vector<16x128xf32>, i32 -> vector<16x128xf32>
    %cst_14 = arith.constant 0.000000e+00 : f32
    %42 = vector.shape_cast %18 : vector<16x1xi1> to vector<16x1xi1>
    %43 = vector.broadcast %42 : vector<16x1xi1> to vector<16x128xi1>
    %44 = vector.broadcast %cst_14 : f32 to vector<16x128xf32>
    %45 = arith.select %43, %41, %44 : vector<16x128xi1>, vector<16x128xf32>
    %c15_i32_15 = arith.constant 15 : i32
    %46 = tpu.dynamic_rotate %40 by %c15_i32_15 dim 0 : vector<16x128xf32>, i32 -> vector<16x128xf32>
    %cst_16 = arith.constant 0.000000e+00 : f32
    %47 = vector.shape_cast %20 : vector<16x1xi1> to vector<16x1xi1>
    %48 = vector.broadcast %47 : vector<16x1xi1> to vector<16x128xi1>
    %49 = vector.broadcast %cst_16 : f32 to vector<16x128xf32>
    %50 = arith.select %48, %46, %49 : vector<16x128xi1>, vector<16x128xf32>
    %51 = tpu.concatenate %45, %40, %50 in 1 : vector<16x128xf32>, vector<16x128xf32>, vector<16x128xf32> -> vector<16x384xf32>
    %52 = arith.truncf %51 : vector<16x384xf32> to vector<16x384xbf16>
    %c0_17 = arith.constant 0 : index
    %c0_18 = arith.constant 0 : index
    %53 = vector.load %arg4[%c0_17, %c0_18] : memref<384x128xbf16, #tpu.memory_space<vmem>>, vector<384x128xbf16>
    %cst_19 = arith.constant dense<0.000000e+00> : vector<16x128xf32>
    %54 = tpu.matmul %52, %53, %cst_19 {dimension_numbers = #tpu.dot_dimension_numbers<[1], [0], [0], [1], [0, 0, 1, 1], [], []>} : vector<16x384xbf16>, vector<384x128xbf16>, vector<16x128xf32> -> vector<16x128xf32>
    %c0_20 = arith.constant 0 : index
    %c0_21 = arith.constant 0 : index
    %55 = vector.load %arg5[%c0_20, %c0_21] : memref<1x128xf32, #tpu.memory_space<vmem>>, vector<1x128xf32>
    %56 = vector.broadcast %55 : vector<1x128xf32> to vector<16x128xf32>
    %57 = arith.addf %54, %56 : vector<16x128xf32>
    %cst_22 = arith.constant 0.000000e+00 : f32
    %58 = vector.broadcast %cst_22 : f32 to vector<16x128xf32>
    %59 = arith.maximumf %57, %58 : vector<16x128xf32>
    %c0_23 = arith.constant 0 : index
    %c0_24 = arith.constant 0 : index
    %60 = vector.load %arg6[%c0_23, %c0_24] : memref<16x128xf32, #tpu.memory_space<vmem>>, vector<16x128xf32>
    tpu.vector_store %arg6[%c0_23, %c0_24], %59 {strides = array<i32>} : memref<16x128xf32, #tpu.memory_space<vmem>>, vector<16x128xf32>,
    return
  }
  func.func @transform_0(%arg0: i32) -> (i32, i32) {
    %c0_i32 = arith.constant 0 : i32
    %c0_i32_0 = arith.constant 0 : i32
    return %arg0, %c0_i32 : i32, i32
  }
  func.func @transform_1(%arg0: i32) -> (i32, i32) {
    %c0_i32 = arith.constant 0 : i32
    %c0_i32_0 = arith.constant 0 : i32
    %c0_i32_1 = arith.constant 0 : i32
    return %c0_i32, %c0_i32_0 : i32, i32
  }
  func.func @transform_2(%arg0: i32) -> (i32, i32) {
    %c0_i32 = arith.constant 0 : i32
    %c0_i32_0 = arith.constant 0 : i32
    %c0_i32_1 = arith.constant 0 : i32
    return %c0_i32, %c0_i32_0 : i32, i32
  }
  func.func @transform_3(%arg0: i32) -> (i32, i32) {
    %c0_i32 = arith.constant 0 : i32
    %c0_i32_0 = arith.constant 0 : i32
    %c0_i32_1 = arith.constant 0 : i32
    return %c0_i32, %c0_i32_0 : i32, i32
  }
  func.func @transform_4(%arg0: i32) -> (i32, i32) {
    %c0_i32 = arith.constant 0 : i32
    %c0_i32_0 = arith.constant 0 : i32
    %c0_i32_1 = arith.constant 0 : i32
    return %c0_i32, %c0_i32_0 : i32, i32
  }
  func.func @transform_5(%arg0: i32) -> (i32, i32) {
    %c0_i32 = arith.constant 0 : i32
    %c0_i32_0 = arith.constant 0 : i32
    return %arg0, %c0_i32 : i32, i32
  }
}

</mosaic_0001>

<llo_original>
// kernel: double_convolution.1
$region0: #{double_convolution.1}
  #allocation0 [shape = 'u32[]', space=smem, size = 0x4, offset = 0x4, fixed_abs, tag = 'smem constant byte address 0x4 - core index']
  #allocation1 [shape = 'u32[144,128]{1,0:T(1,128)}', space=vmem, size = 0x12000, scoped, tag = 'internal scratch']
  %s0 = inlined_call_operand.vmem [shape: f32[32,64], index: 0, kind: input, shape index: {}]
  %s1 = inlined_call_operand.vmem [shape: bf16[192,128], index: 1, kind: input, shape index: {}]
  %s2 = inlined_call_operand.vmem [shape: f32[1,128], index: 2, kind: input, shape index: {}]
  %s3 = inlined_call_operand.vmem [shape: bf16[384,128], index: 3, kind: input, shape index: {}]
  %s4 = inlined_call_operand.vmem [shape: f32[1,128], index: 4, kind: input, shape index: {}]
  %s5 = inlined_call_operand.vmem [shape: f32[32,128], index: 5, kind: output, shape index: {}]
  %s6 = sld [smem:[#allocation0]]
  $region53: #{double_convolution.1} parent=0
    _
  %s8 = ssub.s32 1, %s6
  %s9 = scalar_select 0, %s8, %s6
  loop: start=0, step=1, limit=4
  $region2: #{double_convolution.1} parent=0 // loop_pre_header
    _
  $region3: #{double_convolution.1} parent=0 // loop_header
    %s11 = sphi 0, %s15
    %p12 = scmp.ge.s32.totalorder %s11, 4
    %s21 = sphi 0, %s23
    %s24 = sphi 0, %s21
    %s25 = sphi 0, %s24
    %s41 = sphi 0, %s25
    %s45 = sphi 0, %s45
    %s47 = sphi 0, %s45
    %s48 = sphi 0, %s47
    %s62 = sphi 0, %s48
    %s66 = sphi 0, %s66
    %s68 = sphi 0, %s66
    %s69 = sphi 0, %s68
    %s83 = sphi 0, %s69
    %s87 = sphi 0, %s87
    %s89 = sphi 0, %s87
    %s90 = sphi 0, %s89
    %s104 = sphi 0, %s90
    %s108 = sphi 0, %s108
    %s110 = sphi 0, %s108
    %s111 = sphi 0, %s110
    %s125 = sphi 0, %s111
    %s131 = sphi 0, %s133
    %s134 = sphi 0, %s131
    %s135 = sphi 0, %s134
    %s151 = sphi 0, %s135
  $region4: #{double_convolution.1} parent=0 // loop_header_branch
    %14 = sbr.rel (%p12) target = $region8
  $region5: #{double_convolution.1} parent=0 // loop_body
    %s16 = ssub.s32 %s11, 1
    %s17 = ssub.s32 %s11, 2
    %s18 = sadd.s32 %s11, 1
    %s19 = ssub.s32 %s11, %s18
    %p20 = scmp.eq.s32.totalorder %s19, 0
    %s22 = sadd.s32 %s21, 1
    %s23 = scalar_select %p20, %s21, %s22
    %p26 = pneg %p20
    %p27 = scmp.eq.s32.totalorder %s11, 1
    %p28 = por %p26, %p27
    %p29 = scmp.ne.s32.totalorder %s21, %s24
    %p30 = scmp.eq.s32.totalorder %s11, 0
    %p31 = por %p29, %p30
    %p32 = scmp.ne.s32.totalorder %s21, %s24
    %p33 = scmp.eq.s32.totalorder %s16, 1
    %p34 = por %p32, %p33
    %p35 = scmp.ne.s32.totalorder %s24, %s25
    %p36 = scmp.eq.s32.totalorder %s16, 0
    %p37 = por %p35, %p36
    %p38 = scmp.ne.s32.totalorder %s24, %s25
    %p39 = scmp.eq.s32.totalorder %s17, 1
    %p40 = por %p38, %p39
    %p42 = scmp.ne.s32.totalorder %s25, %s41
    %p43 = scmp.eq.s32.totalorder %s17, 0
    %p44 = por %p42, %p43
    %s46 = sadd.s32 %s45, 1
    %p49 = scmp.eq.s32.totalorder %s11, 1
    %p50 = scmp.ne.s32.totalorder %s45, %s47
    %p51 = scmp.eq.s32.totalorder %s11, 0
    %p52 = por %p50, %p51
    %p53 = scmp.ne.s32.totalorder %s45, %s47
    %p54 = scmp.eq.s32.totalorder %s16, 1
    %p55 = por %p53, %p54
    %p56 = scmp.ne.s32.totalorder %s47, %s48
    %p57 = scmp.eq.s32.totalorder %s16, 0
    %p58 = por %p56, %p57
    %p59 = scmp.ne.s32.totalorder %s47, %s48
    %p60 = scmp.eq.s32.totalorder %s17, 1
    %p61 = por %p59, %p60
    %p63 = scmp.ne.s32.totalorder %s48, %s62
    %p64 = scmp.eq.s32.totalorder %s17, 0
    %p65 = por %p63, %p64
    %s67 = sadd.s32 %s66, 1
    %p70 = scmp.eq.s32.totalorder %s11, 1
    %p71 = scmp.ne.s32.totalorder %s66, %s68
    %p72 = scmp.eq.s32.totalorder %s11, 0
    %p73 = por %p71, %p72
    %p74 = scmp.ne.s32.totalorder %s66, %s68
    %p75 = scmp.eq.s32.totalorder %s16, 1
    %p76 = por %p74, %p75
    %p77 = scmp.ne.s32.totalorder %s68, %s69
    %p78 = scmp.eq.s32.totalorder %s16, 0
    %p79 = por %p77, %p78
    %p80 = scmp.ne.s32.totalorder %s68, %s69
    %p81 = scmp.eq.s32.totalorder %s17, 1
    %p82 = por %p80, %p81
    %p84 = scmp.ne.s32.totalorder %s69, %s83
    %p85 = scmp.eq.s32.totalorder %s17, 0
    %p86 = por %p84, %p85
    %s88 = sadd.s32 %s87, 1
    %p91 = scmp.eq.s32.totalorder %s11, 1
    %p92 = scmp.ne.s32.totalorder %s87, %s89
    %p93 = scmp.eq.s32.totalorder %s11, 0
    %p94 = por %p92, %p93
    %p95 = scmp.ne.s32.totalorder %s87, %s89
    %p96 = scmp.eq.s32.totalorder %s16, 1
    %p97 = por %p95, %p96
    %p98 = scmp.ne.s32.totalorder %s89, %s90
    %p99 = scmp.eq.s32.totalorder %s16, 0
    %p100 = por %p98, %p99
    %p101 = scmp.ne.s32.totalorder %s89, %s90
    %p102 = scmp.eq.s32.totalorder %s17, 1
    %p103 = por %p101, %p102
    %p105 = scmp.ne.s32.totalorder %s90, %s104
    %p106 = scmp.eq.s32.totalorder %s17, 0
    %p107 = por %p105, %p106
    %s109 = sadd.s32 %s108, 1
    %p112 = scmp.eq.s32.totalorder %s11, 1
    %p113 = scmp.ne.s32.totalorder %s108, %s110
    %p114 = scmp.eq.s32.totalorder %s11, 0
    %p115 = por %p113, %p114
    %p116 = scmp.ne.s32.totalorder %s108, %s110
    %p117 = scmp.eq.s32.totalorder %s16, 1
    %p118 = por %p116, %p117
    %p119 = scmp.ne.s32.totalorder %s110, %s111
    %p120 = scmp.eq.s32.totalorder %s16, 0
    %p121 = por %p119, %p120
    %p122 = scmp.ne.s32.totalorder %s110, %s111
    %p123 = scmp.eq.s32.totalorder %s17, 1
    %p124 = por %p122, %p123
    %p126 = scmp.ne.s32.totalorder %s111, %s125
    %p127 = scmp.eq.s32.totalorder %s17, 0
    %p128 = por %p126, %p127
    %s129 = ssub.s32 %s11, %s18
    %p130 = scmp.eq.s32.totalorder %s129, 0
    %s132 = sadd.s32 %s131, 1
    %s133 = scalar_select %p130, %s131, %s132
    %p136 = pneg %p130
    %p137 = scmp.eq.s32.totalorder %s11, 1
    %p138 = por %p136, %p137
    %p139 = scmp.ne.s32.totalorder %s131, %s134
    %p140 = scmp.eq.s32.totalorder %s11, 0
    %p141 = por %p139, %p140
    %p142 = scmp.ne.s32.totalorder %s131, %s134
    %p143 = scmp.eq.s32.totalorder %s16, 1
    %p144 = por %p142, %p143
    %p145 = scmp.ne.s32.totalorder %s134, %s135
    %p146 = scmp.eq.s32.totalorder %s16, 0
    %p147 = por %p145, %p146
    %p148 = scmp.ne.s32.totalorder %s134, %s135
    %p149 = scmp.eq.s32.totalorder %s17, 1
    %p150 = por %p148, %p149
    %p152 = scmp.ne.s32.totalorder %s135, %s151
    %p153 = scmp.eq.s32.totalorder %s17, 0
    %p154 = por %p152, %p153
    %p155 = scmp.le.s32.totalorder 1, %s11
    %p156 = scmp.lt.s32.totalorder %s11, 3
    %p157 = pnand %p155, %p156
    %p158 = pneg %p157
    // Predicated region
    $region9: #{double_convolution.1} parent=5 // pred_check
      _
    $region10: #{double_convolution.1} parent=5 // pred_check_branch
      %160 = sbr.rel (%p157) target = $region12
    $region11: #{double_convolution.1} parent=5 // pred_region
      %s161 = ssub.s32 %s11, 1
      // Predicated region
      $region13: #{double_convolution.1} parent=11 // pred_check
        %p162 = pneg %p58
      $region14: #{double_convolution.1} parent=11 // pred_check_branch
        %164 = sbr.rel (%p162) target = $region16
      $region15: #{double_convolution.1} parent=11 // pred_region
        _
      $region16: #{double_convolution.1} parent=11 // pred_fallthru
        _
      // Predicated region
      $region17: #{double_convolution.1} parent=11 // pred_check
        %p165 = pneg %p79
      $region18: #{double_convolution.1} parent=11 // pred_check_branch
        %167 = sbr.rel (%p165) target = $region20
      $region19: #{double_convolution.1} parent=11 // pred_region
        _
      $region20: #{double_convolution.1} parent=11 // pred_fallthru
        _
      // Predicated region
      $region21: #{double_convolution.1} parent=11 // pred_check
        %p168 = pneg %p100
      $region22: #{double_convolution.1} parent=11 // pred_check_branch
        %170 = sbr.rel (%p168) target = $region24
      $region23: #{double_convolution.1} parent=11 // pred_region
        _
      $region24: #{double_convolution.1} parent=11 // pred_fallthru
        _
      // Predicated region
      $region25: #{double_convolution.1} parent=11 // pred_check
        %p171 = pneg %p121
      $region26: #{double_convolution.1} parent=11 // pred_check_branch
        %173 = sbr.rel (%p171) target = $region28
      $region27: #{double_convolution.1} parent=11 // pred_region
        _
      $region28: #{double_convolution.1} parent=11 // pred_fallthru
        _
    $region12: #{double_convolution.1} parent=5 // pred_fallthru
      _
    %p174 = scmp.lt.s32.totalorder %s11, 2
    // Predicated region
    $region29: #{double_convolution.1} parent=5 // pred_check
      %p175 = pneg %p174
    $region30: #{double_convolution.1} parent=5 // pred_check_branch
      %177 = sbr.rel (%p175) target = $region32
    $region31: #{double_convolution.1} parent=5 // pred_region
      // Predicated region
      $region33: #{double_convolution.1} parent=31 // pred_check
        %p178 = pneg %p31
      $region34: #{double_convolution.1} parent=31 // pred_check_branch
        %180 = sbr.rel (%p178) target = $region36
      $region35: #{double_convolution.1} parent=31 // pred_region
        %s181 = smul.u32 2, %s11
        %p182 = scmp.lt.s32.totalorder %s181, 3
        %s183 = scalar_select %p182, %s181, 3
        %s184 = smul.addr %s183, 8
        %s185 = scalar_lea.vmem %s0, %s184
        %s186 = smul.u32 2, %s11
      $region36: #{double_convolution.1} parent=31 // pred_fallthru
        _
    $region32: #{double_convolution.1} parent=5 // pred_fallthru
      _
    %p187 = scmp.le.s32.totalorder 1, %s11
    %p188 = scmp.lt.s32.totalorder %s11, 3
    %p189 = pnand %p187, %p188
    %p190 = pneg %p189
    // Predicated region
    $region37: #{double_convolution.1} parent=5 // pred_check
      _
    $region38: #{double_convolution.1} parent=5 // pred_check_branch
      %192 = sbr.rel (%p189) target = $region40
    $region39: #{double_convolution.1} parent=5 // pred_region
      %s193 = ssub.s32 %s11, 1
      %s194 = smul.u32 2, %s16
      %p195 = scmp.lt.s32.totalorder %s194, 3
      %s196 = scalar_select %p195, %s194, 3
      %s197 = smul.addr %s196, 8
      %s198 = scalar_lea.vmem %s0, %s197
      %p199 = pneg %p37
      %p200 = pneg %p34
      %p201 = pneg %p58
      %p202 = pneg %p55
      %p203 = pneg %p79
      %p204 = pneg %p76
      %p205 = pneg %p100
      %p206 = pneg %p97
      %p207 = pneg %p121
      %p208 = pneg %p118
      %p209 = pneg %p147
      %p210 = pneg %p144
      %s211 = smul.u32 2, %s16
      %p212 = scmp.lt.s32.totalorder %s211, 3
      %s213 = scalar_select %p212, %s211, 3
      %s214 = smul.addr %s213, 8
      %s215 = scalar_lea.vmem %s5, %s214
      %s216 = smul.u32 2, %s16
      %p217 = scmp.lt.s32.totalorder %s216, 3
      %s218 = scalar_select %p217, %s216, 3
      %s219 = smul.addr %s218, 8
      %s220 = scalar_lea.vmem %s0, %s219
      %s221 = smul.u32 2, %s16
      %s222 = smul.u32 2, %s16
      %p223 = scmp.lt.s32.totalorder %s222, 3
      %s224 = scalar_select %p223, %s222, 3
      %s225 = smul.addr %s224, 8
      %s226 = scalar_lea.vmem %s5, %s225
      %s227 = smul.u32 2, %s16
      %v229 = vlaneseq
      %v230 = vshrl.u32 %v229, 7
      %v231 = vadd.s32 %v230, 8
      %vm232 = vcmp.lt.s32.totalorder %v230, 0
      %v233 = vsub.s32 0, %v230
      %v234 = vsel %vm232, %v233, %v230
      %v235 = vshrl.u32 %v234, 4
      %v236 = vand.u32 %v234, 15
      %v237 = vsub.s32 0, %v236
      %v238 = vsel %vm232, %v237, %v236
      %vm239 = vcmp.lt.s32.totalorder %v231, 0
      %v240 = vsub.s32 0, %v231
      %v241 = vsel %vm239, %v240, %v231
      %v242 = vshrl.u32 %v241, 4
      %v243 = vand.u32 %v241, 15
      %v244 = vsub.s32 0, %v243
      %v245 = vsel %vm239, %v244, %v243
      %vm246 = vcmp.ne.s32.totalorder %v238, 0
      %vm247 = vcmp.ne.s32.totalorder %v245, 0
      %vm248 = vcmp.lt.s32.totalorder %v238, 0
      %vm249 = vcmp.lt.s32.totalorder %v245, 0
      %vm250 = vmand %vm248, %vm246
      %vm251 = vmand %vm249, %vm247
      %v252 = vadd.s32 %v238, 16
      %v253 = vadd.s32 %v245, 16
      %v254 = vsel %vm250, %v252, %v238
      %v255 = vsel %vm251, %v253, %v245
      %vm256 = vcmp.ge.s32.totalorder %v254, 1
      %vm257 = vcmp.ge.s32.totalorder %v255, 1
      %vm258 = vcmp.le.s32.totalorder %v254, 14
      %vm259 = vcmp.le.s32.totalorder %v255, 14
      %v260 = vld [vmem:[%s220] sm:$0xff]
      %v261 = vld [vmem:[%s220 + $0x8] sm:$0xff]
      %v262 = vrot.slane %v260, 7
      %v263 = vrot.slane %v261, 7
      %vm264 = vcmp.lt.s32.totalorder %v230, 1
      %v265 = vsel %vm264, %v262, %v263
      %v266 = vsel %vm264, %v263, %v262
      %v267 = vsel %vm256, 1, 0
      %v268 = vsel %vm257, 1, 0
      %vm269 = vcmp.eq.s32.totalorder %v267, 1
      %vm270 = vcmp.eq.s32.totalorder %v268, 1
      %v271 = vsel %vm269, %v266, 0.0
      %v272 = vsel %vm270, %v265, 0.0
      %v273 = vrot.slane %v260, 1
      %v274 = vrot.slane %v261, 1
      %vm275 = vcmp.lt.s32.totalorder %v230, 7
      %v276 = vsel %vm275, %v273, %v274
      %v277 = vsel %vm275, %v274, %v273
      %v278 = vsel %vm258, 1, 0
      %v279 = vsel %vm259, 1, 0
      %vm280 = vcmp.eq.s32.totalorder %v278, 1
      %vm281 = vcmp.eq.s32.totalorder %v279, 1
      %v282 = vsel %vm280, %v276, 0.0
      %v283 = vsel %vm281, %v277, 0.0
      %286 = vrot.lane.b32.xlu0 %v260, 64
      %v287 = vpop.permute.xlu0 %286
      %288 = vrot.lane.b32.xlu0 %v261, 64
      %v289 = vpop.permute.xlu0 %288
      %vm292 = vcmask 523264
      %v293 = vsel %vm292, %v271, %v287
      %v294 = vsel %vm292, %v272, %v289
      %v295 = vpack.c.bf16 %v294, %v293
      %v296 = vpack.c.bf16 %v283, %v282
      %v297 = vld [vmem:[%s1] sm:$0xf]
      %v298 = vld [vmem:[%s1 + $0x4] sm:$0xf]
      %v299 = vld [vmem:[%s1 + $0x8] sm:$0xf]
      %v300 = vld [vmem:[%s1 + $0xc] sm:$0xf]
      %v301 = vld [vmem:[%s1 + $0x10] sm:$0xf]
      %v302 = vld [vmem:[%s1 + $0x14] sm:$0xf]
      %v303 = vld [vmem:[%s1 + $0x18] sm:$0xf]
      %v304 = vld [vmem:[%s1 + $0x1c] sm:$0xf]
      %v305 = vld [vmem:[%s1 + $0x20] sm:$0xf]
      %v306 = vld [vmem:[%s1 + $0x24] sm:$0xf]
      %v307 = vld [vmem:[%s1 + $0x28] sm:$0xf]
      %v308 = vld [vmem:[%s1 + $0x2c] sm:$0xf]
      %v309 = vld [vmem:[%s1 + $0x30] sm:$0xf]
      %v310 = vld [vmem:[%s1 + $0x34] sm:$0xf]
      %v311 = vld [vmem:[%s1 + $0x38] sm:$0xf]
      %v312 = vld [vmem:[%s1 + $0x3c] sm:$0xf]
      %v313 = vld [vmem:[%s1 + $0x40] sm:$0xf]
      %v314 = vld [vmem:[%s1 + $0x44] sm:$0xf]
      %v315 = vld [vmem:[%s1 + $0x48] sm:$0xf]
      %v316 = vld [vmem:[%s1 + $0x4c] sm:$0xf]
      %v317 = vld [vmem:[%s1 + $0x50] sm:$0xf]
      %v318 = vld [vmem:[%s1 + $0x54] sm:$0xf]
      %v319 = vld [vmem:[%s1 + $0x58] sm:$0xf]
      %v320 = vld [vmem:[%s1 + $0x5c] sm:$0xf]
      %v321 = vld [vmem:[%s2] sm:$0x1]
      %v323 = vlaneseq
      %v324 = vshrl.u32 %v323, 7
      %v325 = vsub.s32 0, %v324
      %v326 = vrot.slane %v321, %v325
      %v352 = vunpack.c.l.b16 %v297
      %v353 = vunpack.c.l.b16 %v298
      %v354 = vunpack.c.l.b16 %v299
      %v355 = vunpack.c.l.b16 %v300
      %v356 = vunpack.c.l.b16 %v301
      %v357 = vunpack.c.l.b16 %v302
      %v358 = vunpack.c.l.b16 %v303
      %v359 = vunpack.c.l.b16 %v304
      %v360 = vunpack.c.l.b16 %v305
      %v361 = vunpack.c.l.b16 %v306
      %v362 = vunpack.c.l.b16 %v307
      %v363 = vunpack.c.l.b16 %v308
      %v364 = vunpack.c.l.b16 %v309
      %v365 = vunpack.c.l.b16 %v310
      %v366 = vunpack.c.l.b16 %v311
      %v367 = vunpack.c.l.b16 %v312
      %v368 = vunpack.c.l.b16 %v313
      %v369 = vunpack.c.l.b16 %v314
      %v370 = vunpack.c.l.b16 %v315
      %v371 = vunpack.c.l.b16 %v316
      %v372 = vunpack.c.l.b16 %v317
      %v373 = vunpack.c.l.b16 %v318
      %v374 = vunpack.c.l.b16 %v319
      %v375 = vunpack.c.l.b16 %v320
      %v376 = vpack.c.b16 %v353, %v352
      %v377 = vpack.c.b16 %v355, %v354
      %v378 = vpack.c.b16 %v357, %v356
      %v379 = vpack.c.b16 %v359, %v358
      %v380 = vpack.c.b16 %v361, %v360
      %v381 = vpack.c.b16 %v363, %v362
      %v382 = vpack.c.b16 %v365, %v364
      %v383 = vpack.c.b16 %v367, %v366
      %v384 = vpack.c.b16 %v369, %v368
      %v385 = vpack.c.b16 %v371, %v370
      %v386 = vpack.c.b16 %v373, %v372
      %v387 = vpack.c.b16 %v375, %v374
      %v401 = vsel %vm292, %v296, 0
      %403 = vmatprep.subr.bf16.mxu0 0
      %404 = vmatpush1.bf16.msra.mxu0 %v376
      %405 = vmatprep.subr.bf16.mxu0 0
      %406 = vmatpush1.bf16.msra.mxu0 %v377
      %407 = vmatprep.subr.bf16.mxu0 0
      %408 = vmatpush1.bf16.msra.mxu0 %v378
      %409 = vmatprep.subr.bf16.mxu0 0
      %410 = vmatpush1.bf16.msra.mxu0 %v379
      %411 = vmatprep.subr.bf16.mxu0 0
      %412 = vmatpush1.bf16.msra.mxu0 %v380
      %413 = vmatprep.subr.bf16.mxu0 0
      %414 = vmatpush1.bf16.msra.mxu0 %v381
      %415 = vmatprep.subr.bf16.mxu0 0
      %416 = vmatpush1.bf16.msra.mxu0 %v382
      %417 = vmatprep.subr.bf16.mxu0 0
      %418 = vmatpush1.bf16.msra.mxu0 %v383
      %419 = vmatprep.subr.bf16.mxu0 0
      %420 = vmatpush1.bf16.msra.mxu0 %v384
      %421 = vmatprep.subr.bf16.mxu0 0
      %422 = vmatpush1.bf16.msra.mxu0 %v385
      %423 = vmatprep.subr.bf16.mxu0 0
      %424 = vmatpush1.bf16.msra.mxu0 %v386
      %425 = vmatprep.subr.bf16.mxu0 0
      %426 = vmatpush1.bf16.msra.mxu0 %v387
      %427 = vmatprep.subr.bf16.mxu0 0
      %428 = vmatpush1.bf16.msra.mxu0 0
      %429 = vmatprep.subr.bf16.mxu0 0
      %430 = vmatpush1.bf16.msra.mxu0 0
      %431 = vmatprep.subr.bf16.mxu0 0
      %432 = vmatpush1.bf16.msra.mxu0 0
      %433 = vmatprep.subr.bf16.mxu0 0
      %434 = vmatpush1.bf16.msra.mxu0 0
      %435 = vmatprep.mubr.bf16.mxu0 %v401
      %436 = vmatmul.mubr.bf16.gmra.mrb[0].mxu0 %v295
      %v437 = vpop.f32.mrb[0].mxu0
      %v438 = vadd.f32 %v326, %v437
      %v439 = vpop.f32.mrb[0].mxu0
      %v440 = vpop.f32.mrb[0].mxu0
      %v441 = vadd.f32 %v326, %v440
      %v442 = vpop.f32.mrb[0].mxu0
      %443 = vdwg.mxu0
      %v444 = vmax.f32 %v438, 0.0
      %v445 = vmax.f32 %v441, 0.0
      %v446 = vrot.slane %v444, 7
      %v447 = vrot.slane %v445, 7
      %v448 = vsel %vm264, %v446, %v447
      %v449 = vsel %vm264, %v447, %v446
      %v450 = vsel %vm269, %v449, 0.0
      %v451 = vsel %vm270, %v448, 0.0
      %v452 = vrot.slane %v444, 1
      %v453 = vrot.slane %v445, 1
      %v454 = vsel %vm275, %v452, %v453
      %v455 = vsel %vm275, %v453, %v452
      %v456 = vsel %vm280, %v454, 0.0
      %v457 = vsel %vm281, %v455, 0.0
      %v458 = vpack.c.bf16 %v451, %v450
      %v459 = vpack.c.bf16 %v445, %v444
      %v460 = vpack.c.bf16 %v457, %v456
      %v461 = vld [vmem:[%s3] sm:$0xf]
      %v462 = vld [vmem:[%s3 + $0x4] sm:$0xf]
      %v463 = vld [vmem:[%s3 + $0x8] sm:$0xf]
      %v464 = vld [vmem:[%s3 + $0xc] sm:$0xf]
      %v465 = vld [vmem:[%s3 + $0x10] sm:$0xf]
      %v466 = vld [vmem:[%s3 + $0x14] sm:$0xf]
      %v467 = vld [vmem:[%s3 + $0x18] sm:$0xf]
      %v468 = vld [vmem:[%s3 + $0x1c] sm:$0xf]
      %v469 = vld [vmem:[%s3 + $0x20] sm:$0xf]
      %v470 = vld [vmem:[%s3 + $0x24] sm:$0xf]
      %v471 = vld [vmem:[%s3 + $0x28] sm:$0xf]
      %v472 = vld [vmem:[%s3 + $0x2c] sm:$0xf]
      %v473 = vld [vmem:[%s3 + $0x30] sm:$0xf]
      %v474 = vld [vmem:[%s3 + $0x34] sm:$0xf]
      %v475 = vld [vmem:[%s3 + $0x38] sm:$0xf]
      %v476 = vld [vmem:[%s3 + $0x3c] sm:$0xf]
      %v477 = vld [vmem:[%s3 + $0x40] sm:$0xf]
      %v478 = vld [vmem:[%s3 + $0x44] sm:$0xf]
      %v479 = vld [vmem:[%s3 + $0x48] sm:$0xf]
      %v480 = vld [vmem:[%s3 + $0x4c] sm:$0xf]
      %v481 = vld [vmem:[%s3 + $0x50] sm:$0xf]
      %v482 = vld [vmem:[%s3 + $0x54] sm:$0xf]
      %v483 = vld [vmem:[%s3 + $0x58] sm:$0xf]
      %v484 = vld [vmem:[%s3 + $0x5c] sm:$0xf]
      %v485 = vld [vmem:[%s3 + $0x60] sm:$0xf]
      %v486 = vld [vmem:[%s3 + $0x64] sm:$0xf]
      %v487 = vld [vmem:[%s3 + $0x68] sm:$0xf]
      %v488 = vld [vmem:[%s3 + $0x6c] sm:$0xf]
      %v489 = vld [vmem:[%s3 + $0x70] sm:$0xf]
      %v490 = vld [vmem:[%s3 + $0x74] sm:$0xf]
      %v491 = vld [vmem:[%s3 + $0x78] sm:$0xf]
      %v492 = vld [vmem:[%s3 + $0x7c] sm:$0xf]
      %v493 = vld [vmem:[%s3 + $0x80] sm:$0xf]
      %v494 = vld [vmem:[%s3 + $0x84] sm:$0xf]
      %v495 = vld [vmem:[%s3 + $0x88] sm:$0xf]
      %v496 = vld [vmem:[%s3 + $0x8c] sm:$0xf]
      %v497 = vld [vmem:[%s3 + $0x90] sm:$0xf]
      %v498 = vld [vmem:[%s3 + $0x94] sm:$0xf]
      %v499 = vld [vmem:[%s3 + $0x98] sm:$0xf]
      %v500 = vld [vmem:[%s3 + $0x9c] sm:$0xf]
      %v501 = vld [vmem:[%s3 + $0xa0] sm:$0xf]
      %v502 = vld [vmem:[%s3 + $0xa4] sm:$0xf]
      %v503 = vld [vmem:[%s3 + $0xa8] sm:$0xf]
      %v504 = vld [vmem:[%s3 + $0xac] sm:$0xf]
      %v505 = vld [vmem:[%s3 + $0xb0] sm:$0xf]
      %v506 = vld [vmem:[%s3 + $0xb4] sm:$0xf]
      %v507 = vld [vmem:[%s3 + $0xb8] sm:$0xf]
      %v508 = vld [vmem:[%s3 + $0xbc] sm:$0xf]
      %v509 = vld [vmem:[%s4] sm:$0x1]
      %v511 = vlaneseq
      %v512 = vshrl.u32 %v511, 7
      %v513 = vsub.s32 0, %v512
      %v514 = vrot.slane %v509, %v513
      %v564 = vunpack.c.l.b16 %v461
      %v565 = vunpack.c.l.b16 %v462
      %v566 = vunpack.c.l.b16 %v463
      %v567 = vunpack.c.l.b16 %v464
      %v568 = vunpack.c.l.b16 %v465
      %v569 = vunpack.c.l.b16 %v466
      %v570 = vunpack.c.l.b16 %v467
      %v571 = vunpack.c.l.b16 %v468
      %v572 = vunpack.c.l.b16 %v469
      %v573 = vunpack.c.l.b16 %v470
      %v574 = vunpack.c.l.b16 %v471
      %v575 = vunpack.c.l.b16 %v472
      %v576 = vunpack.c.l.b16 %v473
      %v577 = vunpack.c.l.b16 %v474
      %v578 = vunpack.c.l.b16 %v475
      %v579 = vunpack.c.l.b16 %v476
      %v580 = vunpack.c.l.b16 %v477
      %v581 = vunpack.c.l.b16 %v478
      %v582 = vunpack.c.l.b16 %v479
      %v583 = vunpack.c.l.b16 %v480
      %v584 = vunpack.c.l.b16 %v481
      %v585 = vunpack.c.l.b16 %v482
      %v586 = vunpack.c.l.b16 %v483
      %v587 = vunpack.c.l.b16 %v484
      %v588 = vunpack.c.l.b16 %v485
      %v589 = vunpack.c.l.b16 %v486
      %v590 = vunpack.c.l.b16 %v487
      %v591 = vunpack.c.l.b16 %v488
      %v592 = vunpack.c.l.b16 %v489
      %v593 = vunpack.c.l.b16 %v490
      %v594 = vunpack.c.l.b16 %v491
      %v595 = vunpack.c.l.b16 %v492
      %v596 = vunpack.c.l.b16 %v493
      %v597 = vunpack.c.l.b16 %v494
      %v598 = vunpack.c.l.b16 %v495
      %v599 = vunpack.c.l.b16 %v496
      %v600 = vunpack.c.l.b16 %v497
      %v601 = vunpack.c.l.b16 %v498
      %v602 = vunpack.c.l.b16 %v499
      %v603 = vunpack.c.l.b16 %v500
      %v604 = vunpack.c.l.b16 %v501
      %v605 = vunpack.c.l.b16 %v502
      %v606 = vunpack.c.l.b16 %v503
      %v607 = vunpack.c.l.b16 %v504
      %v608 = vunpack.c.l.b16 %v505
      %v609 = vunpack.c.l.b16 %v506
      %v610 = vunpack.c.l.b16 %v507
      %v611 = vunpack.c.l.b16 %v508
      %v612 = vpack.c.b16 %v565, %v564
      %v613 = vpack.c.b16 %v567, %v566
      %v614 = vpack.c.b16 %v569, %v568
      %v615 = vpack.c.b16 %v571, %v570
      %v616 = vpack.c.b16 %v573, %v572
      %v617 = vpack.c.b16 %v575, %v574
      %v618 = vpack.c.b16 %v577, %v576
      %v619 = vpack.c.b16 %v579, %v578
      %v620 = vpack.c.b16 %v581, %v580
      %v621 = vpack.c.b16 %v583, %v582
      %v622 = vpack.c.b16 %v585, %v584
      %v623 = vpack.c.b16 %v587, %v586
      %v624 = vpack.c.b16 %v589, %v588
      %v625 = vpack.c.b16 %v591, %v590
      %v626 = vpack.c.b16 %v593, %v592
      %v627 = vpack.c.b16 %v595, %v594
      %v628 = vpack.c.b16 %v597, %v596
      %v629 = vpack.c.b16 %v599, %v598
      %v630 = vpack.c.b16 %v601, %v600
      %v631 = vpack.c.b16 %v603, %v602
      %v632 = vpack.c.b16 %v605, %v604
      %v633 = vpack.c.b16 %v607, %v606
      %v634 = vpack.c.b16 %v609, %v608
      %v635 = vpack.c.b16 %v611, %v610
      %660 = vmatprep.subr.bf16.mxu0 0
      %661 = vmatpush1.bf16.msra.mxu0 %v612
      %662 = vmatprep.subr.bf16.mxu0 0
      %663 = vmatpush1.bf16.msra.mxu0 %v613
      %664 = vmatprep.subr.bf16.mxu0 0
      %665 = vmatpush1.bf16.msra.mxu0 %v614
      %666 = vmatprep.subr.bf16.mxu0 0
      %667 = vmatpush1.bf16.msra.mxu0 %v615
      %668 = vmatprep.subr.bf16.mxu0 0
      %669 = vmatpush1.bf16.msra.mxu0 %v616
      %670 = vmatprep.subr.bf16.mxu0 0
      %671 = vmatpush1.bf16.msra.mxu0 %v617
      %672 = vmatprep.subr.bf16.mxu0 0
      %673 = vmatpush1.bf16.msra.mxu0 %v618
      %674 = vmatprep.subr.bf16.mxu0 0
      %675 = vmatpush1.bf16.msra.mxu0 %v619
      %676 = vmatprep.subr.bf16.mxu0 0
      %677 = vmatpush1.bf16.msra.mxu0 %v620
      %678 = vmatprep.subr.bf16.mxu0 0
      %679 = vmatpush1.bf16.msra.mxu0 %v621
      %680 = vmatprep.subr.bf16.mxu0 0
      %681 = vmatpush1.bf16.msra.mxu0 %v622
      %682 = vmatprep.subr.bf16.mxu0 0
      %683 = vmatpush1.bf16.msra.mxu0 %v623
      %684 = vmatprep.subr.bf16.mxu0 0
      %685 = vmatpush1.bf16.msra.mxu0 %v624
      %686 = vmatprep.subr.bf16.mxu0 0
      %687 = vmatpush1.bf16.msra.mxu0 %v625
      %688 = vmatprep.subr.bf16.mxu0 0
      %689 = vmatpush1.bf16.msra.mxu0 %v626
      %690 = vmatprep.subr.bf16.mxu0 0
      %691 = vmatpush1.bf16.msra.mxu0 %v627
      %692 = vmatprep.mubr.bf16.mxu0 %v459
      %693 = vmatmul.mubr.bf16.gmra.mrb[0].mxu0 %v458
      %v694 = vpop.f32.mrb[0].mxu0
      %v695 = vadd.f32 %v514, %v694
      %v696 = vpop.f32.mrb[0].mxu0
      %v697 = vpop.f32.mrb[0].mxu0
      %v698 = vadd.f32 %v514, %v697
      %v699 = vpop.f32.mrb[0].mxu0
      %700 = vdwg.mxu0
      %701 = vmatprep.subr.bf16.mxu0 0
      %702 = vmatpush1.bf16.msra.mxu0 %v628
      %703 = vmatprep.subr.bf16.mxu0 0
      %704 = vmatpush1.bf16.msra.mxu0 %v629
      %705 = vmatprep.subr.bf16.mxu0 0
      %706 = vmatpush1.bf16.msra.mxu0 %v630
      %707 = vmatprep.subr.bf16.mxu0 0
      %708 = vmatpush1.bf16.msra.mxu0 %v631
      %709 = vmatprep.subr.bf16.mxu0 0
      %710 = vmatpush1.bf16.msra.mxu0 %v632
      %711 = vmatprep.subr.bf16.mxu0 0
      %712 = vmatpush1.bf16.msra.mxu0 %v633
      %713 = vmatprep.subr.bf16.mxu0 0
      %714 = vmatpush1.bf16.msra.mxu0 %v634
      %715 = vmatprep.subr.bf16.mxu0 0
      %716 = vmatpush1.bf16.msra.mxu0 %v635
      %717 = vmatprep.subr.bf16.mxu0 0
      %718 = vmatpush1.bf16.msra.mxu0 0
      %719 = vmatprep.subr.bf16.mxu0 0
      %720 = vmatpush1.bf16.msra.mxu0 0
      %721 = vmatprep.subr.bf16.mxu0 0
      %722 = vmatpush1.bf16.msra.mxu0 0
      %723 = vmatprep.subr.bf16.mxu0 0
      %724 = vmatpush1.bf16.msra.mxu0 0
      %725 = vmatprep.subr.bf16.mxu0 0
      %726 = vmatpush1.bf16.msra.mxu0 0
      %727 = vmatprep.subr.bf16.mxu0 0
      %728 = vmatpush1.bf16.msra.mxu0 0
      %729 = vmatprep.subr.bf16.mxu0 0
      %730 = vmatpush1.bf16.msra.mxu0 0
      %731 = vmatprep.subr.bf16.mxu0 0
      %732 = vmatpush1.bf16.msra.mxu0 0
      %733 = vmatprep.mubr.bf16.mxu0 0
      %734 = vmatmul.mubr.bf16.gmra.mrb[0].mxu0 %v460
      %v735 = vpop.f32.mrb[0].mxu0
      %v736 = vadd.f32 %v695, %v735
      %v737 = vpop.f32.mrb[0].mxu0
      %v738 = vpop.f32.mrb[0].mxu0
      %v739 = vadd.f32 %v698, %v738
      %v740 = vpop.f32.mrb[0].mxu0
      %741 = vdwg.mxu0
      %v742 = vmax.f32 %v736, 0.0
      %v743 = vmax.f32 %v739, 0.0
      %744 = vst [vmem:[%s226] sm:$0xff] %v742
      %745 = vst [vmem:[%s226 + $0x8] sm:$0xff] %v743
      %s746 = smul.u32 2, %s16
      %p747 = scmp.lt.s32.totalorder %s746, 3
      %s748 = scalar_select %p747, %s746, 3
      %s749 = smul.addr %s748, 8
      %s750 = scalar_lea.vmem %s5, %s749
      // Predicated region
      $region41: #{double_convolution.1} parent=39 // pred_check
        %p751 = pneg %p144
      $region42: #{double_convolution.1} parent=39 // pred_check_branch
        %753 = sbr.rel (%p751) target = $region44
      $region43: #{double_convolution.1} parent=39 // pred_region
        %s754 = smul.u32 2, %s16
      $region44: #{double_convolution.1} parent=39 // pred_fallthru
        _
    $region40: #{double_convolution.1} parent=5 // pred_fallthru
      _
    %p755 = scmp.le.s32.totalorder 2, %s11
    // Predicated region
    $region45: #{double_convolution.1} parent=5 // pred_check
      %p756 = pneg %p755
    $region46: #{double_convolution.1} parent=5 // pred_check_branch
      %758 = sbr.rel (%p756) target = $region48
    $region47: #{double_convolution.1} parent=5 // pred_region
      %s759 = ssub.s32 %s11, 2
      // Predicated region
      $region49: #{double_convolution.1} parent=47 // pred_check
        %p760 = pneg %p150
      $region50: #{double_convolution.1} parent=47 // pred_check_branch
        %762 = sbr.rel (%p760) target = $region52
      $region51: #{double_convolution.1} parent=47 // pred_region
        %s763 = smul.u32 2, %s17
        %p764 = scmp.lt.s32.totalorder %s763, 3
        %s765 = scalar_select %p764, %s763, 3
        %s766 = smul.addr %s765, 8
        %s767 = scalar_lea.vmem %s5, %s766
      $region52: #{double_convolution.1} parent=47 // pred_fallthru
        _
    $region48: #{double_convolution.1} parent=5 // pred_fallthru
      _
  $region6: #{double_convolution.1} parent=0 // loop_footer
    %s15 = sadd.s32 1, %s11
  $region7: #{double_convolution.1} parent=0 // loop_footer_branch
    %10 = sbr.rel target = $region3
  $region8: #{double_convolution.1} parent=0 // loop_exit
    _

</llo_original>
